<compile_context>
chip_gen: v5e
topology: v5e:2x2
jax: 0.10.0
libtpu: 0.0.40
codegen_flags: <defaults>
</compile_context>

<pallas_src>
import jax
import jax.numpy as jnp
from jax.experimental import pallas as pl
from jax.experimental.pallas import tpu as pltpu

BN_EPS = 1e-5

# slots in the weight blob / rows in the bias blob
W1, W2, WN1, WN2, WG1, WG2 = range(6)
B1, B2, BN1, BN2, BG1, BG2 = range(6)


def gnn_kernel(x_ref, a_ref, pool_ref, w_ref, b_ref, out_ref):
    """One step for the whole batch.

    x_ref:    [M, P]    bf16  (M = B*N node rows, features zero-padded to P)
    a_ref:    [M, M]    bf16  block-diagonal normalized adjacency
    pool_ref: [B, M]    bf16  per-graph mean-pool matrix (rows = 1/N on own graph)
    w_ref:    [6, P, P] bf16  packed weights (BatchNorm folded into W1/W2)
    b_ref:    [8, P]    f32   packed bias rows (BatchNorm folded into rows B1/B2)
    out_ref:  [B, P]    f32
    """
    f32, bf16 = jnp.float32, jnp.bfloat16
    x = x_ref[...]
    a = a_ref[...]

    # ---- GCN layer 1 (BN folded into W1'/b1'), ReLU; dropout = eval no-op ----
    h = jnp.dot(x, w_ref[W1], preferred_element_type=f32)
    h = jnp.dot(a, h.astype(bf16), preferred_element_type=f32)
    h = jnp.maximum(h + b_ref[B1:B1 + 1], 0.0)

    # ---- GCN layer 2 (BN folded), ReLU ----
    h = jnp.dot(h.astype(bf16), w_ref[W2], preferred_element_type=f32)
    h = jnp.dot(a, h.astype(bf16), preferred_element_type=f32)
    h = jnp.maximum(h + b_ref[B2:B2 + 1], 0.0)

    # ---- node-level MLP (StockGNN.fc1 -> ReLU -> fc2) ----
    h = jnp.dot(h.astype(bf16), w_ref[WN1], preferred_element_type=f32) + b_ref[BN1:BN1 + 1]
    h = jnp.maximum(h, 0.0)
    h = jnp.dot(h.astype(bf16), w_ref[WN2], preferred_element_type=f32) + b_ref[BN2:BN2 + 1]

    # ---- batched global mean pool as one MXU matmul: [B, M] @ [M, P] ----
    g = jnp.dot(pool_ref[...], h.astype(bf16), preferred_element_type=f32)

    # ---- graph-level MLP (fc1 -> ReLU -> fc2), batched over all graphs ----
    g = jnp.dot(g.astype(bf16), w_ref[WG1], preferred_element_type=f32) + b_ref[BG1:BG1 + 1]
    g = jnp.maximum(g, 0.0)
    g = jnp.dot(g.astype(bf16), w_ref[WG2], preferred_element_type=f32) + b_ref[BG2:BG2 + 1]

    out_ref[...] = g


def graph_level_stock_gnn(x, a_hat, params):
    """x: [B, N, input_dim] f32; a_hat: [B, N, N] f32. Returns [B, output_dim] f32."""
    B, N, F = x.shape
    hidden = params["w1"].shape[1]
    out_dim = params["wg2"].shape[1]
    P = max(hidden, F, out_dim)
    M = B * N

    # ---- fold eval-mode BatchNorm (gamma, beta, mean, var, eps) into GCN weights ----
    s1 = params["g1"] * jax.lax.rsqrt(params["v1"] + BN_EPS)           # [1, hidden]
    w1 = params["w1"] * s1
    b1 = (params["b1"] - params["m1"]) * s1 + params["be1"]
    s2 = params["g2"] * jax.lax.rsqrt(params["v2"] + BN_EPS)
    w2 = params["w2"] * s2
    b2 = (params["b2"] - params["m2"]) * s2 + params["be2"]

    # ---- pack weights (zero-padded to P x P) into one bf16 blob; biases in f32 ----
    def pad_mat(w):
        r, c = w.shape
        return jnp.pad(w, ((0, P - r), (0, P - c)))

    def pad_vec(v):
        v = v.reshape(1, -1)
        return jnp.pad(v, ((0, 0), (0, P - v.shape[1])))

    w_blob = jnp.stack(
        [pad_mat(w1), pad_mat(w2),
         pad_mat(params["wn1"]), pad_mat(params["wn2"]),
         pad_mat(params["wg1"]), pad_mat(params["wg2"])],
        axis=0).astype(jnp.bfloat16)                                    # [6, P, P]
    b_blob = jnp.concatenate(
        [pad_vec(b1), pad_vec(b2),
         pad_vec(params["bn1"]), pad_vec(params["bn2"]),
         pad_vec(params["bg1"]), pad_vec(params["bg2"]),
         jnp.zeros((2, P), jnp.float32)], axis=0)                       # [8, P] f32

    # ---- whole batch as one node matrix + block-diagonal adjacency + pool matrix ----
    x_flat = jnp.pad(x, ((0, 0), (0, 0), (0, P - F))).reshape(M, P).astype(jnp.bfloat16)
    eye_b = jnp.eye(B, dtype=a_hat.dtype)
    a_bd = (eye_b[:, None, :, None] * a_hat[:, :, None, :]).reshape(M, M)
    a_bd = a_bd.astype(jnp.bfloat16)                                    # [M, M]
    pool = (jnp.repeat(jnp.eye(B, dtype=jnp.float32), N, axis=1) / N)
    pool = pool.astype(jnp.bfloat16)                                    # [B, M]

    # Single invocation (grid = ()): all operands live single-buffered in VMEM.
    # For much larger batches on v7x one could split graphs into 2 block-diagonal
    # chunks with grid=(2,) + dimension_semantics=("parallel",) for megacore.
    vmem = pl.BlockSpec(memory_space=pltpu.MemorySpace.VMEM)
    out = pl.pallas_call(
        gnn_kernel,
        out_shape=jax.ShapeDtypeStruct((B, P), jnp.float32),
        in_specs=[vmem, vmem, vmem, vmem, vmem],
        out_specs=vmem,
    )(x_flat, a_bd, pool, w_blob, b_blob)
    return out[:, :out_dim]


def make_params(key, input_dim, hidden_dim, output_dim):
    ks = jax.random.split(key, 8)
    half = hidden_dim // 2

    def lin(k, fan_in, fan_out):
        return jax.random.normal(k, (fan_in, fan_out), jnp.float32) * 0.1

    return {
        # GCN layer 1
        "w1": lin(ks[0], input_dim, hidden_dim),
        "b1": jnp.zeros((1, hidden_dim), jnp.float32),
        "g1": jnp.ones((1, hidden_dim), jnp.float32),
        "be1": jnp.zeros((1, hidden_dim), jnp.float32),
        "m1": jnp.zeros((1, hidden_dim), jnp.float32),
        "v1": jnp.ones((1, hidden_dim), jnp.float32),
        # GCN layer 2
        "w2": lin(ks[1], hidden_dim, hidden_dim),
        "b2": jnp.zeros((1, hidden_dim), jnp.float32),
        "g2": jnp.ones((1, hidden_dim), jnp.float32),
        "be2": jnp.zeros((1, hidden_dim), jnp.float32),
        "m2": jnp.zeros((1, hidden_dim), jnp.float32),
        "v2": jnp.ones((1, hidden_dim), jnp.float32),
        # node-level MLP (StockGNN.fc1/fc2, output_dim == hidden_dim here)
        "wn1": lin(ks[2], hidden_dim, half),
        "bn1": jax.random.normal(ks[3], (1, half), jnp.float32) * 0.01,
        "wn2": lin(ks[4], half, hidden_dim),
        "bn2": jnp.zeros((1, hidden_dim), jnp.float32),
        # graph-level MLP
        "wg1": lin(ks[5], hidden_dim, half),
        "bg1": jax.random.normal(ks[6], (1, half), jnp.float32) * 0.01,
        "wg2": lin(ks[7], half, output_dim),
        "bg2": jnp.zeros((1, output_dim), jnp.float32),
    }


def make_normalized_adjacency(key, num_nodes, num_edges):
    """Dense GCN-normalized adjacency: D^-1/2 (A + I) D^-1/2 (symmetric)."""
    ks, kd = jax.random.split(key)
    src = jax.random.randint(ks, (num_edges,), 0, num_nodes)
    dst = jax.random.randint(kd, (num_edges,), 0, num_nodes)
    a = jnp.zeros((num_nodes, num_nodes), jnp.float32)
    a = a.at[dst, src].set(1.0)
    a = jnp.maximum(a, a.T)                        # undirected
    a = a + jnp.eye(num_nodes, dtype=jnp.float32)  # self-loops
    a = jnp.minimum(a, 1.0)
    deg = jnp.sum(a, axis=1)
    d_inv_sqrt = jax.lax.rsqrt(deg)
    return a * d_inv_sqrt[:, None] * d_inv_sqrt[None, :]


# TODO(synk): dense block-diagonal A_hat assumes B*N nodes fit VMEM; a very
# large stock universe needs row-tiled A (and a vmem_limit_bytes bump),
# earliest on v7x's 64 MiB VMEM.

if __name__ == "__main__":
    key = jax.random.PRNGKey(0)
    k_x, k_e, k_p = jax.random.split(key, 3)

    num_graphs = 8     # graphs (time windows) batched per pallas_call
    num_nodes = 16     # stocks per graph
    input_dim = 8      # per-node feature dim
    hidden_dim = 32
    output_dim = 1
    num_edges = 40

    x = jax.random.normal(k_x, (num_graphs, num_nodes, input_dim), jnp.float32)
    edge_keys = jax.random.split(k_e, num_graphs)
    a_hat = jnp.stack(
        [make_normalized_adjacency(k, num_nodes, num_edges) for k in edge_keys])
    params = make_params(k_p, input_dim, hidden_dim, output_dim)

    out = graph_level_stock_gnn(x, a_hat, params)
    jax.block_until_ready(out)
    assert out.shape == (num_graphs, output_dim)
    print("KERNEL_OK")
</pallas_src>

<mosaic_0001>
module attributes {stable_mosaic.version = 11 : i64} {
  func.func @gnn_kernel(%arg0: memref<128x32xbf16, #tpu.memory_space<vmem>>, %arg1: memref<128x128xbf16, #tpu.memory_space<vmem>>, %arg2: memref<8x128xbf16, #tpu.memory_space<vmem>>, %arg3: memref<6x32x32xbf16, #tpu.memory_space<vmem>>, %arg4: memref<8x32xf32, #tpu.memory_space<vmem>>, %arg5: memref<8x32xf32, #tpu.memory_space<vmem>>) attributes {dimension_semantics = [], scalar_prefetch = 0 : i64, scratch_operands = 0 : i64, tpu.core_type = #tpu.core_type<tc>} {
    %c0 = arith.constant 0 : index
    %c0_0 = arith.constant 0 : index
    %0 = vector.load %arg0[%c0, %c0_0] : memref<128x32xbf16, #tpu.memory_space<vmem>>, vector<128x32xbf16>
    %c0_1 = arith.constant 0 : index
    %c0_2 = arith.constant 0 : index
    %1 = vector.load %arg1[%c0_1, %c0_2] : memref<128x128xbf16, #tpu.memory_space<vmem>>, vector<128x128xbf16>
    %c0_3 = arith.constant 0 : index
    %c0_4 = arith.constant 0 : index
    %c0_5 = arith.constant 0 : index
    %2 = vector.load %arg3[%c0_3, %c0_4, %c0_5] : memref<6x32x32xbf16, #tpu.memory_space<vmem>>, vector<1x32x32xbf16>
    %3 = vector.shape_cast %2 : vector<1x32x32xbf16> to vector<32x32xbf16>
    %cst = arith.constant dense<0.000000e+00> : vector<128x32xf32>
    %4 = tpu.matmul %0, %3, %cst {dimension_numbers = #tpu.dot_dimension_numbers<[1], [0], [0], [1], [0, 0, 1, 1], [], []>} : vector<128x32xbf16>, vector<32x32xbf16>, vector<128x32xf32> -> vector<128x32xf32>
    %5 = arith.truncf %4 : vector<128x32xf32> to vector<128x32xbf16>
    %cst_6 = arith.constant dense<0.000000e+00> : vector<128x32xf32>
    %6 = tpu.matmul %1, %5, %cst_6 {dimension_numbers = #tpu.dot_dimension_numbers<[1], [0], [0], [1], [0, 0, 1, 1], [], []>} : vector<128x128xbf16>, vector<128x32xbf16>, vector<128x32xf32> -> vector<128x32xf32>
    %c0_7 = arith.constant 0 : index
    %c0_8 = arith.constant 0 : index
    %7 = vector.load %arg4[%c0_7, %c0_8] : memref<8x32xf32, #tpu.memory_space<vmem>>, vector<1x32xf32>
    %8 = vector.broadcast %7 : vector<1x32xf32> to vector<128x32xf32>
    %9 = arith.addf %6, %8 : vector<128x32xf32>
    %cst_9 = arith.constant 0.000000e+00 : f32
    %10 = vector.broadcast %cst_9 : f32 to vector<128x32xf32>
    %11 = arith.maximumf %9, %10 : vector<128x32xf32>
    %12 = arith.truncf %11 : vector<128x32xf32> to vector<128x32xbf16>
    %c1 = arith.constant 1 : index
    %c0_10 = arith.constant 0 : index
    %c0_11 = arith.constant 0 : index
    %13 = vector.load %arg3[%c1, %c0_10, %c0_11] : memref<6x32x32xbf16, #tpu.memory_space<vmem>>, vector<1x32x32xbf16>
    %14 = vector.shape_cast %13 : vector<1x32x32xbf16> to vector<32x32xbf16>
    %cst_12 = arith.constant dense<0.000000e+00> : vector<128x32xf32>
    %15 = tpu.matmul %12, %14, %cst_12 {dimension_numbers = #tpu.dot_dimension_numbers<[1], [0], [0], [1], [0, 0, 1, 1], [], []>} : vector<128x32xbf16>, vector<32x32xbf16>, vector<128x32xf32> -> vector<128x32xf32>
    %16 = arith.truncf %15 : vector<128x32xf32> to vector<128x32xbf16>
    %cst_13 = arith.constant dense<0.000000e+00> : vector<128x32xf32>
    %17 = tpu.matmul %1, %16, %cst_13 {dimension_numbers = #tpu.dot_dimension_numbers<[1], [0], [0], [1], [0, 0, 1, 1], [], []>} : vector<128x128xbf16>, vector<128x32xbf16>, vector<128x32xf32> -> vector<128x32xf32>
    %c1_14 = arith.constant 1 : index
    %c0_15 = arith.constant 0 : index
    %18 = vector.load %arg4[%c1_14, %c0_15] : memref<8x32xf32, #tpu.memory_space<vmem>>, vector<1x32xf32>
    %19 = vector.broadcast %18 : vector<1x32xf32> to vector<128x32xf32>
    %20 = arith.addf %17, %19 : vector<128x32xf32>
    %cst_16 = arith.constant 0.000000e+00 : f32
    %21 = vector.broadcast %cst_16 : f32 to vector<128x32xf32>
    %22 = arith.maximumf %20, %21 : vector<128x32xf32>
    %23 = arith.truncf %22 : vector<128x32xf32> to vector<128x32xbf16>
    %c2 = arith.constant 2 : index
    %c0_17 = arith.constant 0 : index
    %c0_18 = arith.constant 0 : index
    %24 = vector.load %arg3[%c2, %c0_17, %c0_18] : memref<6x32x32xbf16, #tpu.memory_space<vmem>>, vector<1x32x32xbf16>
    %25 = vector.shape_cast %24 : vector<1x32x32xbf16> to vector<32x32xbf16>
    %cst_19 = arith.constant dense<0.000000e+00> : vector<128x32xf32>
    %26 = tpu.matmul %23, %25, %cst_19 {dimension_numbers = #tpu.dot_dimension_numbers<[1], [0], [0], [1], [0, 0, 1, 1], [], []>} : vector<128x32xbf16>, vector<32x32xbf16>, vector<128x32xf32> -> vector<128x32xf32>
    %c2_20 = arith.constant 2 : index
    %c0_21 = arith.constant 0 : index
    %27 = vector.load %arg4[%c2_20, %c0_21] : memref<8x32xf32, #tpu.memory_space<vmem>>, vector<1x32xf32>
    %28 = vector.broadcast %27 : vector<1x32xf32> to vector<128x32xf32>
    %29 = arith.addf %26, %28 : vector<128x32xf32>
    %cst_22 = arith.constant 0.000000e+00 : f32
    %30 = vector.broadcast %cst_22 : f32 to vector<128x32xf32>
    %31 = arith.maximumf %29, %30 : vector<128x32xf32>
    %32 = arith.truncf %31 : vector<128x32xf32> to vector<128x32xbf16>
    %c3 = arith.constant 3 : index
    %c0_23 = arith.constant 0 : index
    %c0_24 = arith.constant 0 : index
    %33 = vector.load %arg3[%c3, %c0_23, %c0_24] : memref<6x32x32xbf16, #tpu.memory_space<vmem>>, vector<1x32x32xbf16>
    %34 = vector.shape_cast %33 : vector<1x32x32xbf16> to vector<32x32xbf16>
    %cst_25 = arith.constant dense<0.000000e+00> : vector<128x32xf32>
    %35 = tpu.matmul %32, %34, %cst_25 {dimension_numbers = #tpu.dot_dimension_numbers<[1], [0], [0], [1], [0, 0, 1, 1], [], []>} : vector<128x32xbf16>, vector<32x32xbf16>, vector<128x32xf32> -> vector<128x32xf32>
    %c3_26 = arith.constant 3 : index
    %c0_27 = arith.constant 0 : index
    %36 = vector.load %arg4[%c3_26, %c0_27] : memref<8x32xf32, #tpu.memory_space<vmem>>, vector<1x32xf32>
    %37 = vector.broadcast %36 : vector<1x32xf32> to vector<128x32xf32>
    %38 = arith.addf %35, %37 : vector<128x32xf32>
    %c0_28 = arith.constant 0 : index
    %c0_29 = arith.constant 0 : index
    %39 = vector.load %arg2[%c0_28, %c0_29] : memref<8x128xbf16, #tpu.memory_space<vmem>>, vector<8x128xbf16>
    %40 = arith.truncf %38 : vector<128x32xf32> to vector<128x32xbf16>
    %cst_30 = arith.constant dense<0.000000e+00> : vector<8x32xf32>
    %41 = tpu.matmul %39, %40, %cst_30 {dimension_numbers = #tpu.dot_dimension_numbers<[1], [0], [0], [1], [0, 0, 1, 1], [], []>} : vector<8x128xbf16>, vector<128x32xbf16>, vector<8x32xf32> -> vector<8x32xf32>
    %42 = arith.truncf %41 : vector<8x32xf32> to vector<8x32xbf16>
    %c4 = arith.constant 4 : index
    %c0_31 = arith.constant 0 : index
    %c0_32 = arith.constant 0 : index
    %43 = vector.load %arg3[%c4, %c0_31, %c0_32] : memref<6x32x32xbf16, #tpu.memory_space<vmem>>, vector<1x32x32xbf16>
    %44 = vector.shape_cast %43 : vector<1x32x32xbf16> to vector<32x32xbf16>
    %cst_33 = arith.constant dense<0.000000e+00> : vector<8x32xf32>
    %45 = tpu.matmul %42, %44, %cst_33 {dimension_numbers = #tpu.dot_dimension_numbers<[1], [0], [0], [1], [0, 0, 1, 1], [], []>} : vector<8x32xbf16>, vector<32x32xbf16>, vector<8x32xf32> -> vector<8x32xf32>
    %c4_34 = arith.constant 4 : index
    %c0_35 = arith.constant 0 : index
    %46 = vector.load %arg4[%c4_34, %c0_35] : memref<8x32xf32, #tpu.memory_space<vmem>>, vector<1x32xf32>
    %47 = vector.broadcast %46 : vector<1x32xf32> to vector<8x32xf32>
    %48 = arith.addf %45, %47 : vector<8x32xf32>
    %cst_36 = arith.constant 0.000000e+00 : f32
    %49 = vector.broadcast %cst_36 : f32 to vector<8x32xf32>
    %50 = arith.maximumf %48, %49 : vector<8x32xf32>
    %51 = arith.truncf %50 : vector<8x32xf32> to vector<8x32xbf16>
    %c5 = arith.constant 5 : index
    %c0_37 = arith.constant 0 : index
    %c0_38 = arith.constant 0 : index
    %52 = vector.load %arg3[%c5, %c0_37, %c0_38] : memref<6x32x32xbf16, #tpu.memory_space<vmem>>, vector<1x32x32xbf16>
    %53 = vector.shape_cast %52 : vector<1x32x32xbf16> to vector<32x32xbf16>
    %cst_39 = arith.constant dense<0.000000e+00> : vector<8x32xf32>
    %54 = tpu.matmul %51, %53, %cst_39 {dimension_numbers = #tpu.dot_dimension_numbers<[1], [0], [0], [1], [0, 0, 1, 1], [], []>} : vector<8x32xbf16>, vector<32x32xbf16>, vector<8x32xf32> -> vector<8x32xf32>
    %c5_40 = arith.constant 5 : index
    %c0_41 = arith.constant 0 : index
    %55 = vector.load %arg4[%c5_40, %c0_41] : memref<8x32xf32, #tpu.memory_space<vmem>>, vector<1x32xf32>
    %56 = vector.broadcast %55 : vector<1x32xf32> to vector<8x32xf32>
    %57 = arith.addf %54, %56 : vector<8x32xf32>
    %c0_42 = arith.constant 0 : index
    %c0_43 = arith.constant 0 : index
    %58 = vector.load %arg5[%c0_42, %c0_43] : memref<8x32xf32, #tpu.memory_space<vmem>>, vector<8x32xf32>
    tpu.vector_store %arg5[%c0_42, %c0_43], %57 {strides = array<i32>} : memref<8x32xf32, #tpu.memory_space<vmem>>, vector<8x32xf32>,
    return
  }
}

</mosaic_0001>

<llo_original>
// kernel: tpu_custom_call.1
$region0: #{tpu_custom_call.1}
  #allocation0 [shape = 'u32[]', space=smem, size = 0x4, offset = 0x4, fixed_abs, tag = 'smem constant byte address 0x4 - core index']
  #allocation1 [shape = 'u32[72,128]{1,0:T(1,128)}', space=vmem, size = 0x9000, scoped, tag = 'internal scratch']
  %s0 = inlined_call_operand.vmem [shape: bf16[128,32], index: 0, kind: input, shape index: {}]
  %s1 = inlined_call_operand.vmem [shape: bf16[128,128], index: 1, kind: input, shape index: {}]
  %s2 = inlined_call_operand.vmem [shape: bf16[8,128], index: 2, kind: input, shape index: {}]
  %s3 = inlined_call_operand.hbm [shape: bf16[6,32,32], index: 3, kind: input, shape index: {}]
  %s4 = inlined_call_operand.vmem [shape: f32[8,32], index: 4, kind: input, shape index: {}]
  %s5 = inlined_call_operand.hbm [shape: f32[8,32], index: 5, kind: output, shape index: {}]
  %s6 = sld [smem:[#allocation0]]
  $region34: #{tpu_custom_call.1} parent=0
    _
  %s8 = ssub.s32 1, %s6
  %s9 = scalar_select 0, %s8, %s6
  $region1: #{tpu_custom_call.1} parent=0
    #allocation2 [shape = 'u8[49152]{0}', space=vmem, size = 0xc000, scoped, tag = 'input window, operand 3, single buffered']
    #allocation3 [shape = 's32[1]{0}', space=sflag, size = 0x4, scoped, tag = 'scoped memory for tpu_custom_call.1']
    #allocation4 [shape = 's32[1]{0}', space=sflag, size = 0x4, scoped, tag = 'scoped memory for tpu_custom_call.1']
    #allocation5 [shape = 'u8[4096]{0}', space=vmem, size = 0x1000, scoped, tag = 'output window, operand 0, single buffered']
    %10 = vsyncpa [#allocation3], 0
    %11 = vsyncpa [#allocation4], 0
    // Predicated region
    $region2: #{tpu_custom_call.1} parent=1 // pred_check
      _
    $region3: #{tpu_custom_call.1} parent=1 // pred_check_branch
      %13 = sbr.rel (0) target = $region5
    $region4: #{tpu_custom_call.1} parent=1 // pred_region
      _
    $region5: #{tpu_custom_call.1} parent=1 // pred_fallthru
      _
    // Predicated region
    $region6: #{tpu_custom_call.1} parent=1 // pred_check
      _
    $region7: #{tpu_custom_call.1} parent=1 // pred_check_branch
      %15 = sbr.rel (0) target = $region9
    $region8: #{tpu_custom_call.1} parent=1 // pred_region
      _
    $region9: #{tpu_custom_call.1} parent=1 // pred_fallthru
      _
    // Predicated region
    $region10: #{tpu_custom_call.1} parent=1 // pred_check
      _
    $region11: #{tpu_custom_call.1} parent=1 // pred_check_branch
      %17 = sbr.rel (0) target = $region13
    $region12: #{tpu_custom_call.1} parent=1 // pred_region
      _
    $region13: #{tpu_custom_call.1} parent=1 // pred_fallthru
      _
    // Predicated region
    $region14: #{tpu_custom_call.1} parent=1 // pred_check
      _
    $region15: #{tpu_custom_call.1} parent=1 // pred_check_branch
      %19 = sbr.rel (0) target = $region17
    $region16: #{tpu_custom_call.1} parent=1 // pred_region
      %21 = vsyncadd [#allocation3], 0
      %s22 = sshll.u32 %s3, 4
      %s23 = int_to_ptr.hbm [resolvable:$true] %s22
      %s24 = sshll.u32 [#allocation2], 4
      %s25 = int_to_ptr.vmem [resolvable:$true] %s24
      %30 = dma.hbm_to_vmem [thread:$0]  %s23, 1536, %s25, [#allocation3], 64, 64, 4
    $region17: #{tpu_custom_call.1} parent=1 // pred_fallthru
      _
    // Predicated region
    $region18: #{tpu_custom_call.1} parent=1 // pred_check
      _
    $region19: #{tpu_custom_call.1} parent=1 // pred_check_branch
      %32 = sbr.rel (0) target = $region21
    $region20: #{tpu_custom_call.1} parent=1 // pred_region
      _
    $region21: #{tpu_custom_call.1} parent=1 // pred_fallthru
      _
    // Predicated region
    $region22: #{tpu_custom_call.1} parent=1 // pred_check
      _
    $region23: #{tpu_custom_call.1} parent=1 // pred_check_branch
      %34 = sbr.rel (0) target = $region25
    $region24: #{tpu_custom_call.1} parent=1 // pred_region
      %36 = dma.done [#allocation3], 1536
    $region25: #{tpu_custom_call.1} parent=1 // pred_fallthru
      _
    %v38 = vld [vmem:[%s0] sm:$0xf]
    %v39 = vld [vmem:[%s0 + $0x4] sm:$0xf]
    %v40 = vld [vmem:[%s0 + $0x8] sm:$0xf]
    %v41 = vld [vmem:[%s0 + $0xc] sm:$0xf]
    %v42 = vld [vmem:[%s0 + $0x10] sm:$0xf]
    %v43 = vld [vmem:[%s0 + $0x14] sm:$0xf]
    %v44 = vld [vmem:[%s0 + $0x18] sm:$0xf]
    %v45 = vld [vmem:[%s0 + $0x1c] sm:$0xf]
    %v46 = vld [vmem:[%s0 + $0x20] sm:$0xf]
    %v47 = vld [vmem:[%s0 + $0x24] sm:$0xf]
    %v48 = vld [vmem:[%s0 + $0x28] sm:$0xf]
    %v49 = vld [vmem:[%s0 + $0x2c] sm:$0xf]
    %v50 = vld [vmem:[%s0 + $0x30] sm:$0xf]
    %v51 = vld [vmem:[%s0 + $0x34] sm:$0xf]
    %v52 = vld [vmem:[%s0 + $0x38] sm:$0xf]
    %v53 = vld [vmem:[%s0 + $0x3c] sm:$0xf]
    %v54 = vld [vmem:[%s1] sm:$0xf]
    %v55 = vld [vmem:[%s1 + $0x4] sm:$0xf]
    %v56 = vld [vmem:[%s1 + $0x8] sm:$0xf]
    %v57 = vld [vmem:[%s1 + $0xc] sm:$0xf]
    %v58 = vld [vmem:[%s1 + $0x10] sm:$0xf]
    %v59 = vld [vmem:[%s1 + $0x14] sm:$0xf]
    %v60 = vld [vmem:[%s1 + $0x18] sm:$0xf]
    %v61 = vld [vmem:[%s1 + $0x1c] sm:$0xf]
    %v62 = vld [vmem:[%s1 + $0x20] sm:$0xf]
    %v63 = vld [vmem:[%s1 + $0x24] sm:$0xf]
    %v64 = vld [vmem:[%s1 + $0x28] sm:$0xf]
    %v65 = vld [vmem:[%s1 + $0x2c] sm:$0xf]
    %v66 = vld [vmem:[%s1 + $0x30] sm:$0xf]
    %v67 = vld [vmem:[%s1 + $0x34] sm:$0xf]
    %v68 = vld [vmem:[%s1 + $0x38] sm:$0xf]
    %v69 = vld [vmem:[%s1 + $0x3c] sm:$0xf]
    %v70 = vld [vmem:[#allocation2] sm:$0xf]
    %v71 = vld [vmem:[#allocation2 + $0x4] sm:$0xf]
    %v72 = vld [vmem:[#allocation2 + $0x8] sm:$0xf]
    %v73 = vld [vmem:[#allocation2 + $0xc] sm:$0xf]
    %v90 = vunpack.c.l.b16 %v38
    %v91 = vunpack.c.l.b16 %v39
    %v92 = vunpack.c.l.b16 %v40
    %v93 = vunpack.c.l.b16 %v41
    %v94 = vunpack.c.l.b16 %v42
    %v95 = vunpack.c.l.b16 %v43
    %v96 = vunpack.c.l.b16 %v44
    %v97 = vunpack.c.l.b16 %v45
    %v98 = vunpack.c.l.b16 %v46
    %v99 = vunpack.c.l.b16 %v47
    %v100 = vunpack.c.l.b16 %v48
    %v101 = vunpack.c.l.b16 %v49
    %v102 = vunpack.c.l.b16 %v50
    %v103 = vunpack.c.l.b16 %v51
    %v104 = vunpack.c.l.b16 %v52
    %v105 = vunpack.c.l.b16 %v53
    %v106 = vpack.c.b16 %v91, %v90
    %v107 = vpack.c.b16 %v93, %v92
    %v108 = vpack.c.b16 %v95, %v94
    %v109 = vpack.c.b16 %v97, %v96
    %v110 = vpack.c.b16 %v99, %v98
    %v111 = vpack.c.b16 %v101, %v100
    %v112 = vpack.c.b16 %v103, %v102
    %v113 = vpack.c.b16 %v105, %v104
    %v118 = vunpack.c.l.b16 %v70
    %v119 = vunpack.c.l.b16 %v71
    %v120 = vunpack.c.l.b16 %v72
    %v121 = vunpack.c.l.b16 %v73
    %v122 = vpack.c.b16 %v119, %v118
    %v123 = vpack.c.b16 %v121, %v120
    %vm126 = vcmask 261120
    %v128 = vsel %vm126, %v106, 0
    %v131 = vsel %vm126, %v107, 0
    %v134 = vsel %vm126, %v108, 0
    %v137 = vsel %vm126, %v109, 0
    %v140 = vsel %vm126, %v110, 0
    %v143 = vsel %vm126, %v111, 0
    %v146 = vsel %vm126, %v112, 0
    %v149 = vsel %vm126, %v113, 0
    %151 = vmatpush.bf16.msra.mxu0 0
    %152 = vmatpush.bf16.msra.mxu0 0
    %153 = vmatpush.bf16.msra.mxu0 0
    %154 = vmatpush.bf16.msra.mxu0 0
    %155 = vmatpush.bf16.msra.mxu0 0
    %156 = vmatpush.bf16.msra.mxu0 0
    %157 = vmatpush.bf16.msra.mxu0 %v123
    %158 = vmatpush.bf16.msra.mxu0 %v122
    %159 = vmatmul.bf16.gmra.mxu0 %v128
    %v160 = vpop.f32.mrf.mxu0
    %v161 = vadd.f32 0.0, %v160
    %v162 = vpop.f32.mrf.mxu0
    %v163 = vadd.f32 0.0, %v162
    %164 = vmatmul.bf16.gmra.mxu0 %v131
    %v165 = vpop.f32.mrf.mxu0
    %v166 = vadd.f32 0.0, %v165
    %v167 = vpop.f32.mrf.mxu0
    %v168 = vadd.f32 0.0, %v167
    %169 = vmatmul.bf16.gmra.mxu0 %v134
    %v170 = vpop.f32.mrf.mxu0
    %v171 = vadd.f32 0.0, %v170
    %v172 = vpop.f32.mrf.mxu0
    %v173 = vadd.f32 0.0, %v172
    %174 = vmatmul.bf16.gmra.mxu0 %v137
    %v175 = vpop.f32.mrf.mxu0
    %v176 = vadd.f32 0.0, %v175
    %v177 = vpop.f32.mrf.mxu0
    %v178 = vadd.f32 0.0, %v177
    %179 = vmatmul.bf16.gmra.mxu0 %v140
    %v180 = vpop.f32.mrf.mxu0
    %v181 = vadd.f32 0.0, %v180
    %v182 = vpop.f32.mrf.mxu0
    %v183 = vadd.f32 0.0, %v182
    %184 = vmatmul.bf16.gmra.mxu0 %v143
    %v185 = vpop.f32.mrf.mxu0
    %v186 = vadd.f32 0.0, %v185
    %v187 = vpop.f32.mrf.mxu0
    %v188 = vadd.f32 0.0, %v187
    %189 = vmatmul.bf16.gmra.mxu0 %v146
    %v190 = vpop.f32.mrf.mxu0
    %v191 = vadd.f32 0.0, %v190
    %v192 = vpop.f32.mrf.mxu0
    %v193 = vadd.f32 0.0, %v192
    %194 = vmatmul.bf16.gmra.mxu0 %v149
    %v195 = vpop.f32.mrf.mxu0
    %v196 = vadd.f32 0.0, %v195
    %v197 = vpop.f32.mrf.mxu0
    %v198 = vadd.f32 0.0, %v197
    %199 = vdwg.mxu0
    %v200 = vpack.c.bf16 %v163, %v161
    %v201 = vpack.c.bf16 %v168, %v166
    %v202 = vpack.c.bf16 %v173, %v171
    %v203 = vpack.c.bf16 %v178, %v176
    %v204 = vpack.c.bf16 %v183, %v181
    %v205 = vpack.c.bf16 %v188, %v186
    %v206 = vpack.c.bf16 %v193, %v191
    %v207 = vpack.c.bf16 %v198, %v196
    %v208 = vld [vmem:[%s4] sm:$0x1]
    %v209 = vperm.slane %v208, 0
    %v226 = vunpack.c.l.b16 %v54
    %v227 = vunpack.c.l.b16 %v55
    %v228 = vunpack.c.l.b16 %v56
    %v229 = vunpack.c.l.b16 %v57
    %v230 = vunpack.c.l.b16 %v58
    %v231 = vunpack.c.l.b16 %v59
    %v232 = vunpack.c.l.b16 %v60
    %v233 = vunpack.c.l.b16 %v61
    %v234 = vunpack.c.l.b16 %v62
    %v235 = vunpack.c.l.b16 %v63
    %v236 = vunpack.c.l.b16 %v64
    %v237 = vunpack.c.l.b16 %v65
    %v238 = vunpack.c.l.b16 %v66
    %v239 = vunpack.c.l.b16 %v67
    %v240 = vunpack.c.l.b16 %v68
    %v241 = vunpack.c.l.b16 %v69
    %v242 = vpack.c.b16 %v227, %v226
    %v243 = vpack.c.b16 %v229, %v228
    %v244 = vpack.c.b16 %v231, %v230
    %v245 = vpack.c.b16 %v233, %v232
    %v246 = vpack.c.b16 %v235, %v234
    %v247 = vpack.c.b16 %v237, %v236
    %v248 = vpack.c.b16 %v239, %v238
    %v249 = vpack.c.b16 %v241, %v240
    %258 = vmatpush.bf16.msra.mxu0 %v207
    %259 = vmatpush.bf16.msra.mxu0 %v206
    %260 = vmatpush.bf16.msra.mxu0 %v205
    %261 = vmatpush.bf16.msra.mxu0 %v204
    %262 = vmatpush.bf16.msra.mxu0 %v203
    %263 = vmatpush.bf16.msra.mxu0 %v202
    %264 = vmatpush.bf16.msra.mxu0 %v201
    %265 = vmatpush.bf16.msra.mxu0 %v200
    %266 = vmatmul.bf16.gmra.mxu0 %v242
    %v267 = vpop.f32.mrf.mxu0
    %v268 = vadd.f32 %v209, %v267
    %v269 = vpop.f32.mrf.mxu0
    %v270 = vadd.f32 %v209, %v269
    %271 = vmatmul.bf16.gmra.mxu0 %v243
    %v272 = vpop.f32.mrf.mxu0
    %v273 = vadd.f32 %v209, %v272
    %v274 = vpop.f32.mrf.mxu0
    %v275 = vadd.f32 %v209, %v274
    %276 = vmatmul.bf16.gmra.mxu0 %v244
    %v277 = vpop.f32.mrf.mxu0
    %v278 = vadd.f32 %v209, %v277
    %v279 = vpop.f32.mrf.mxu0
    %v280 = vadd.f32 %v209, %v279
    %281 = vmatmul.bf16.gmra.mxu0 %v245
    %v282 = vpop.f32.mrf.mxu0
    %v283 = vadd.f32 %v209, %v282
    %v284 = vpop.f32.mrf.mxu0
    %v285 = vadd.f32 %v209, %v284
    %286 = vmatmul.bf16.gmra.mxu0 %v246
    %v287 = vpop.f32.mrf.mxu0
    %v288 = vadd.f32 %v209, %v287
    %v289 = vpop.f32.mrf.mxu0
    %v290 = vadd.f32 %v209, %v289
    %291 = vmatmul.bf16.gmra.mxu0 %v247
    %v292 = vpop.f32.mrf.mxu0
    %v293 = vadd.f32 %v209, %v292
    %v294 = vpop.f32.mrf.mxu0
    %v295 = vadd.f32 %v209, %v294
    %296 = vmatmul.bf16.gmra.mxu0 %v248
    %v297 = vpop.f32.mrf.mxu0
    %v298 = vadd.f32 %v209, %v297
    %v299 = vpop.f32.mrf.mxu0
    %v300 = vadd.f32 %v209, %v299
    %301 = vmatmul.bf16.gmra.mxu0 %v249
    %v302 = vpop.f32.mrf.mxu0
    %v303 = vadd.f32 %v209, %v302
    %v304 = vpop.f32.mrf.mxu0
    %v305 = vadd.f32 %v209, %v304
    %306 = vdwg.mxu0
    %v307 = vmax.f32 %v268, 0.0
    %v308 = vmax.f32 %v270, 0.0
    %v309 = vmax.f32 %v273, 0.0
    %v310 = vmax.f32 %v275, 0.0
    %v311 = vmax.f32 %v278, 0.0
    %v312 = vmax.f32 %v280, 0.0
    %v313 = vmax.f32 %v283, 0.0
    %v314 = vmax.f32 %v285, 0.0
    %v315 = vmax.f32 %v288, 0.0
    %v316 = vmax.f32 %v290, 0.0
    %v317 = vmax.f32 %v293, 0.0
    %v318 = vmax.f32 %v295, 0.0
    %v319 = vmax.f32 %v298, 0.0
    %v320 = vmax.f32 %v300, 0.0
    %v321 = vmax.f32 %v303, 0.0
    %v322 = vmax.f32 %v305, 0.0
    %v323 = vpack.c.bf16 %v308, %v307
    %v324 = vpack.c.bf16 %v310, %v309
    %v325 = vpack.c.bf16 %v312, %v311
    %v326 = vpack.c.bf16 %v314, %v313
    %v327 = vpack.c.bf16 %v316, %v315
    %v328 = vpack.c.bf16 %v318, %v317
    %v329 = vpack.c.bf16 %v320, %v319
    %v330 = vpack.c.bf16 %v322, %v321
    %s331 = scalar_lea.vmem [#allocation2], 16
    %v332 = vld [vmem:[%s331] sm:$0xf]
    %v333 = vld [vmem:[%s331 + $0x4] sm:$0xf]
    %v334 = vld [vmem:[%s331 + $0x8] sm:$0xf]
    %v335 = vld [vmem:[%s331 + $0xc] sm:$0xf]
    %v340 = vunpack.c.l.b16 %v332
    %v341 = vunpack.c.l.b16 %v333
    %v342 = vunpack.c.l.b16 %v334
    %v343 = vunpack.c.l.b16 %v335
    %v344 = vpack.c.b16 %v341, %v340
    %v345 = vpack.c.b16 %v343, %v342
    %v349 = vsel %vm126, %v323, 0
    %v352 = vsel %vm126, %v324, 0
    %v355 = vsel %vm126, %v325, 0
    %v358 = vsel %vm126, %v326, 0
    %v361 = vsel %vm126, %v327, 0
    %v364 = vsel %vm126, %v328, 0
    %v367 = vsel %vm126, %v329, 0
    %v370 = vsel %vm126, %v330, 0
    %372 = vmatpush.bf16.msra.mxu0 0
    %373 = vmatpush.bf16.msra.mxu0 0
    %374 = vmatpush.bf16.msra.mxu0 0
    %375 = vmatpush.bf16.msra.mxu0 0
    %376 = vmatpush.bf16.msra.mxu0 0
    %377 = vmatpush.bf16.msra.mxu0 0
    %378 = vmatpush.bf16.msra.mxu0 %v345
    %379 = vmatpush.bf16.msra.mxu0 %v344
    %380 = vmatmul.bf16.gmra.mxu0 %v349
    %v381 = vpop.f32.mrf.mxu0
    %v382 = vadd.f32 0.0, %v381
    %v383 = vpop.f32.mrf.mxu0
    %v384 = vadd.f32 0.0, %v383
    %385 = vmatmul.bf16.gmra.mxu0 %v352
    %v386 = vpop.f32.mrf.mxu0
    %v387 = vadd.f32 0.0, %v386
    %v388 = vpop.f32.mrf.mxu0
    %v389 = vadd.f32 0.0, %v388
    %390 = vmatmul.bf16.gmra.mxu0 %v355
    %v391 = vpop.f32.mrf.mxu0
    %v392 = vadd.f32 0.0, %v391
    %v393 = vpop.f32.mrf.mxu0
    %v394 = vadd.f32 0.0, %v393
    %395 = vmatmul.bf16.gmra.mxu0 %v358
    %v396 = vpop.f32.mrf.mxu0
    %v397 = vadd.f32 0.0, %v396
    %v398 = vpop.f32.mrf.mxu0
    %v399 = vadd.f32 0.0, %v398
    %400 = vmatmul.bf16.gmra.mxu0 %v361
    %v401 = vpop.f32.mrf.mxu0
    %v402 = vadd.f32 0.0, %v401
    %v403 = vpop.f32.mrf.mxu0
    %v404 = vadd.f32 0.0, %v403
    %405 = vmatmul.bf16.gmra.mxu0 %v364
    %v406 = vpop.f32.mrf.mxu0
    %v407 = vadd.f32 0.0, %v406
    %v408 = vpop.f32.mrf.mxu0
    %v409 = vadd.f32 0.0, %v408
    %410 = vmatmul.bf16.gmra.mxu0 %v367
    %v411 = vpop.f32.mrf.mxu0
    %v412 = vadd.f32 0.0, %v411
    %v413 = vpop.f32.mrf.mxu0
    %v414 = vadd.f32 0.0, %v413
    %415 = vmatmul.bf16.gmra.mxu0 %v370
    %v416 = vpop.f32.mrf.mxu0
    %v417 = vadd.f32 0.0, %v416
    %v418 = vpop.f32.mrf.mxu0
    %v419 = vadd.f32 0.0, %v418
    %420 = vdwg.mxu0
    %v421 = vpack.c.bf16 %v384, %v382
    %v422 = vpack.c.bf16 %v389, %v387
    %v423 = vpack.c.bf16 %v394, %v392
    %v424 = vpack.c.bf16 %v399, %v397
    %v425 = vpack.c.bf16 %v404, %v402
    %v426 = vpack.c.bf16 %v409, %v407
    %v427 = vpack.c.bf16 %v414, %v412
    %v428 = vpack.c.bf16 %v419, %v417
    %v429 = vld [vmem:[%s4 + $0x1] sm:$0x1]
    %v430 = vperm.slane %v429, 0
    %431 = vmatpush.bf16.msra.mxu0 %v428
    %432 = vmatpush.bf16.msra.mxu0 %v427
    %433 = vmatpush.bf16.msra.mxu0 %v426
    %434 = vmatpush.bf16.msra.mxu0 %v425
    %435 = vmatpush.bf16.msra.mxu0 %v424
    %436 = vmatpush.bf16.msra.mxu0 %v423
    %437 = vmatpush.bf16.msra.mxu0 %v422
    %438 = vmatpush.bf16.msra.mxu0 %v421
    %439 = vmatmul.bf16.gmra.mxu0 %v242
    %v440 = vpop.f32.mrf.mxu0
    %v441 = vadd.f32 %v430, %v440
    %v442 = vpop.f32.mrf.mxu0
    %v443 = vadd.f32 %v430, %v442
    %444 = vmatmul.bf16.gmra.mxu0 %v243
    %v445 = vpop.f32.mrf.mxu0
    %v446 = vadd.f32 %v430, %v445
    %v447 = vpop.f32.mrf.mxu0
    %v448 = vadd.f32 %v430, %v447
    %449 = vmatmul.bf16.gmra.mxu0 %v244
    %v450 = vpop.f32.mrf.mxu0
    %v451 = vadd.f32 %v430, %v450
    %v452 = vpop.f32.mrf.mxu0
    %v453 = vadd.f32 %v430, %v452
    %454 = vmatmul.bf16.gmra.mxu0 %v245
    %v455 = vpop.f32.mrf.mxu0
    %v456 = vadd.f32 %v430, %v455
    %v457 = vpop.f32.mrf.mxu0
    %v458 = vadd.f32 %v430, %v457
    %459 = vmatmul.bf16.gmra.mxu0 %v246
    %v460 = vpop.f32.mrf.mxu0
    %v461 = vadd.f32 %v430, %v460
    %v462 = vpop.f32.mrf.mxu0
    %v463 = vadd.f32 %v430, %v462
    %464 = vmatmul.bf16.gmra.mxu0 %v247
    %v465 = vpop.f32.mrf.mxu0
    %v466 = vadd.f32 %v430, %v465
    %v467 = vpop.f32.mrf.mxu0
    %v468 = vadd.f32 %v430, %v467
    %469 = vmatmul.bf16.gmra.mxu0 %v248
    %v470 = vpop.f32.mrf.mxu0
    %v471 = vadd.f32 %v430, %v470
    %v472 = vpop.f32.mrf.mxu0
    %v473 = vadd.f32 %v430, %v472
    %474 = vmatmul.bf16.gmra.mxu0 %v249
    %v475 = vpop.f32.mrf.mxu0
    %v476 = vadd.f32 %v430, %v475
    %v477 = vpop.f32.mrf.mxu0
    %v478 = vadd.f32 %v430, %v477
    %479 = vdwg.mxu0
    %v480 = vmax.f32 %v441, 0.0
    %v481 = vmax.f32 %v443, 0.0
    %v482 = vmax.f32 %v446, 0.0
    %v483 = vmax.f32 %v448, 0.0
    %v484 = vmax.f32 %v451, 0.0
    %v485 = vmax.f32 %v453, 0.0
    %v486 = vmax.f32 %v456, 0.0
    %v487 = vmax.f32 %v458, 0.0
    %v488 = vmax.f32 %v461, 0.0
    %v489 = vmax.f32 %v463, 0.0
    %v490 = vmax.f32 %v466, 0.0
    %v491 = vmax.f32 %v468, 0.0
    %v492 = vmax.f32 %v471, 0.0
    %v493 = vmax.f32 %v473, 0.0
    %v494 = vmax.f32 %v476, 0.0
    %v495 = vmax.f32 %v478, 0.0
    %v496 = vpack.c.bf16 %v481, %v480
    %v497 = vpack.c.bf16 %v483, %v482
    %v498 = vpack.c.bf16 %v485, %v484
    %v499 = vpack.c.bf16 %v487, %v486
    %v500 = vpack.c.bf16 %v489, %v488
    %v501 = vpack.c.bf16 %v491, %v490
    %v502 = vpack.c.bf16 %v493, %v492
    %v503 = vpack.c.bf16 %v495, %v494
    %s504 = scalar_lea.vmem [#allocation2], 32
    %v505 = vld [vmem:[%s504] sm:$0xf]
    %v506 = vld [vmem:[%s504 + $0x4] sm:$0xf]
    %v507 = vld [vmem:[%s504 + $0x8] sm:$0xf]
    %v508 = vld [vmem:[%s504 + $0xc] sm:$0xf]
    %v509 = vld [vmem:[%s4 + $0x2] sm:$0x1]
    %v510 = vperm.slane %v509, 0
    %v515 = vunpack.c.l.b16 %v505
    %v516 = vunpack.c.l.b16 %v506
    %v517 = vunpack.c.l.b16 %v507
    %v518 = vunpack.c.l.b16 %v508
    %v519 = vpack.c.b16 %v516, %v515
    %v520 = vpack.c.b16 %v518, %v517
    %v524 = vsel %vm126, %v496, 0
    %v527 = vsel %vm126, %v497, 0
    %v530 = vsel %vm126, %v498, 0
    %v533 = vsel %vm126, %v499, 0
    %v536 = vsel %vm126, %v500, 0
    %v539 = vsel %vm126, %v501, 0
    %v542 = vsel %vm126, %v502, 0
    %v545 = vsel %vm126, %v503, 0
    %547 = vmatpush.bf16.msra.mxu0 0
    %548 = vmatpush.bf16.msra.mxu0 0
    %549 = vmatpush.bf16.msra.mxu0 0
    %550 = vmatpush.bf16.msra.mxu0 0
    %551 = vmatpush.bf16.msra.mxu0 0
    %552 = vmatpush.bf16.msra.mxu0 0
    %553 = vmatpush.bf16.msra.mxu0 %v520
    %554 = vmatpush.bf16.msra.mxu0 %v519
    %555 = vmatmul.bf16.gmra.mxu0 %v524
    %v556 = vpop.f32.mrf.mxu0
    %v557 = vadd.f32 %v510, %v556
    %v558 = vpop.f32.mrf.mxu0
    %v559 = vadd.f32 %v510, %v558
    %560 = vmatmul.bf16.gmra.mxu0 %v527
    %v561 = vpop.f32.mrf.mxu0
    %v562 = vadd.f32 %v510, %v561
    %v563 = vpop.f32.mrf.mxu0
    %v564 = vadd.f32 %v510, %v563
    %565 = vmatmul.bf16.gmra.mxu0 %v530
    %v566 = vpop.f32.mrf.mxu0
    %v567 = vadd.f32 %v510, %v566
    %v568 = vpop.f32.mrf.mxu0
    %v569 = vadd.f32 %v510, %v568
    %570 = vmatmul.bf16.gmra.mxu0 %v533
    %v571 = vpop.f32.mrf.mxu0
    %v572 = vadd.f32 %v510, %v571
    %v573 = vpop.f32.mrf.mxu0
    %v574 = vadd.f32 %v510, %v573
    %575 = vmatmul.bf16.gmra.mxu0 %v536
    %v576 = vpop.f32.mrf.mxu0
    %v577 = vadd.f32 %v510, %v576
    %v578 = vpop.f32.mrf.mxu0
    %v579 = vadd.f32 %v510, %v578
    %580 = vmatmul.bf16.gmra.mxu0 %v539
    %v581 = vpop.f32.mrf.mxu0
    %v582 = vadd.f32 %v510, %v581
    %v583 = vpop.f32.mrf.mxu0
    %v584 = vadd.f32 %v510, %v583
    %585 = vmatmul.bf16.gmra.mxu0 %v542
    %v586 = vpop.f32.mrf.mxu0
    %v587 = vadd.f32 %v510, %v586
    %v588 = vpop.f32.mrf.mxu0
    %v589 = vadd.f32 %v510, %v588
    %590 = vmatmul.bf16.gmra.mxu0 %v545
    %v591 = vpop.f32.mrf.mxu0
    %v592 = vadd.f32 %v510, %v591
    %v593 = vpop.f32.mrf.mxu0
    %v594 = vadd.f32 %v510, %v593
    %595 = vdwg.mxu0
    %v596 = vmax.f32 %v557, 0.0
    %v597 = vmax.f32 %v559, 0.0
    %v598 = vmax.f32 %v562, 0.0
    %v599 = vmax.f32 %v564, 0.0
    %v600 = vmax.f32 %v567, 0.0
    %v601 = vmax.f32 %v569, 0.0
    %v602 = vmax.f32 %v572, 0.0
    %v603 = vmax.f32 %v574, 0.0
    %v604 = vmax.f32 %v577, 0.0
    %v605 = vmax.f32 %v579, 0.0
    %v606 = vmax.f32 %v582, 0.0
    %v607 = vmax.f32 %v584, 0.0
    %v608 = vmax.f32 %v587, 0.0
    %v609 = vmax.f32 %v589, 0.0
    %v610 = vmax.f32 %v592, 0.0
    %v611 = vmax.f32 %v594, 0.0
    %v612 = vpack.c.bf16 %v597, %v596
    %v613 = vpack.c.bf16 %v599, %v598
    %v614 = vpack.c.bf16 %v601, %v600
    %v615 = vpack.c.bf16 %v603, %v602
    %v616 = vpack.c.bf16 %v605, %v604
    %v617 = vpack.c.bf16 %v607, %v606
    %v618 = vpack.c.bf16 %v609, %v608
    %v619 = vpack.c.bf16 %v611, %v610
    %s620 = scalar_lea.vmem [#allocation2], 48
    %v621 = vld [vmem:[%s620] sm:$0xf]
    %v622 = vld [vmem:[%s620 + $0x4] sm:$0xf]
    %v623 = vld [vmem:[%s620 + $0x8] sm:$0xf]
    %v624 = vld [vmem:[%s620 + $0xc] sm:$0xf]
    %v625 = vld [vmem:[%s4 + $0x3] sm:$0x1]
    %v626 = vperm.slane %v625, 0
    %v631 = vunpack.c.l.b16 %v621
    %v632 = vunpack.c.l.b16 %v622
    %v633 = vunpack.c.l.b16 %v623
    %v634 = vunpack.c.l.b16 %v624
    %v635 = vpack.c.b16 %v632, %v631
    %v636 = vpack.c.b16 %v634, %v633
    %v640 = vsel %vm126, %v612, 0
    %v643 = vsel %vm126, %v613, 0
    %v646 = vsel %vm126, %v614, 0
    %v649 = vsel %vm126, %v615, 0
    %v652 = vsel %vm126, %v616, 0
    %v655 = vsel %vm126, %v617, 0
    %v658 = vsel %vm126, %v618, 0
    %v661 = vsel %vm126, %v619, 0
    %663 = vmatpush.bf16.msra.mxu0 0
    %664 = vmatpush.bf16.msra.mxu0 0
    %665 = vmatpush.bf16.msra.mxu0 0
    %666 = vmatpush.bf16.msra.mxu0 0
    %667 = vmatpush.bf16.msra.mxu0 0
    %668 = vmatpush.bf16.msra.mxu0 0
    %669 = vmatpush.bf16.msra.mxu0 %v636
    %670 = vmatpush.bf16.msra.mxu0 %v635
    %671 = vmatmul.bf16.gmra.mxu0 %v640
    %v672 = vpop.f32.mrf.mxu0
    %v673 = vadd.f32 %v626, %v672
    %v674 = vpop.f32.mrf.mxu0
    %v675 = vadd.f32 %v626, %v674
    %676 = vmatmul.bf16.gmra.mxu0 %v643
    %v677 = vpop.f32.mrf.mxu0
    %v678 = vadd.f32 %v626, %v677
    %v679 = vpop.f32.mrf.mxu0
    %v680 = vadd.f32 %v626, %v679
    %681 = vmatmul.bf16.gmra.mxu0 %v646
    %v682 = vpop.f32.mrf.mxu0
    %v683 = vadd.f32 %v626, %v682
    %v684 = vpop.f32.mrf.mxu0
    %v685 = vadd.f32 %v626, %v684
    %686 = vmatmul.bf16.gmra.mxu0 %v649
    %v687 = vpop.f32.mrf.mxu0
    %v688 = vadd.f32 %v626, %v687
    %v689 = vpop.f32.mrf.mxu0
    %v690 = vadd.f32 %v626, %v689
    %691 = vmatmul.bf16.gmra.mxu0 %v652
    %v692 = vpop.f32.mrf.mxu0
    %v693 = vadd.f32 %v626, %v692
    %v694 = vpop.f32.mrf.mxu0
    %v695 = vadd.f32 %v626, %v694
    %696 = vmatmul.bf16.gmra.mxu0 %v655
    %v697 = vpop.f32.mrf.mxu0
    %v698 = vadd.f32 %v626, %v697
    %v699 = vpop.f32.mrf.mxu0
    %v700 = vadd.f32 %v626, %v699
    %701 = vmatmul.bf16.gmra.mxu0 %v658
    %v702 = vpop.f32.mrf.mxu0
    %v703 = vadd.f32 %v626, %v702
    %v704 = vpop.f32.mrf.mxu0
    %v705 = vadd.f32 %v626, %v704
    %706 = vmatmul.bf16.gmra.mxu0 %v661
    %v707 = vpop.f32.mrf.mxu0
    %v708 = vadd.f32 %v626, %v707
    %v709 = vpop.f32.mrf.mxu0
    %v710 = vadd.f32 %v626, %v709
    %711 = vdwg.mxu0
    %v712 = vld [vmem:[%s2] sm:$0xf]
    %v713 = vpack.c.bf16 %v675, %v673
    %v714 = vpack.c.bf16 %v680, %v678
    %v715 = vpack.c.bf16 %v685, %v683
    %v716 = vpack.c.bf16 %v690, %v688
    %v717 = vpack.c.bf16 %v695, %v693
    %v718 = vpack.c.bf16 %v700, %v698
    %v719 = vpack.c.bf16 %v705, %v703
    %v720 = vpack.c.bf16 %v710, %v708
    %721 = vmatpush.bf16.msra.mxu0 %v720
    %722 = vmatpush.bf16.msra.mxu0 %v719
    %723 = vmatpush.bf16.msra.mxu0 %v718
    %724 = vmatpush.bf16.msra.mxu0 %v717
    %725 = vmatpush.bf16.msra.mxu0 %v716
    %726 = vmatpush.bf16.msra.mxu0 %v715
    %727 = vmatpush.bf16.msra.mxu0 %v714
    %728 = vmatpush.bf16.msra.mxu0 %v713
    %729 = vmatmul.bf16.gmra.mxu0 %v712
    %v730 = vpop.f32.mrf.mxu0
    %v731 = vadd.f32 0.0, %v730
    %v732 = vpop.f32.mrf.mxu0
    %733 = vdwg.mxu0
    %v734 = vpack.c.bf16 %v731, %v731
    %s735 = scalar_lea.vmem [#allocation2], 64
    %v736 = vld [vmem:[%s735] sm:$0xf]
    %v737 = vld [vmem:[%s735 + $0x4] sm:$0xf]
    %v738 = vld [vmem:[%s735 + $0x8] sm:$0xf]
    %v739 = vld [vmem:[%s735 + $0xc] sm:$0xf]
    %v740 = vld [vmem:[%s4 + $0x4] sm:$0x1]
    %v741 = vperm.slane %v740, 0
    %v746 = vunpack.c.l.b16 %v736
    %v747 = vunpack.c.l.b16 %v737
    %v748 = vunpack.c.l.b16 %v738
    %v749 = vunpack.c.l.b16 %v739
    %v750 = vpack.c.b16 %v747, %v746
    %v751 = vpack.c.b16 %v749, %v748
    %v755 = vsel %vm126, %v734, 0
    %757 = vmatpush.bf16.msra.mxu0 0
    %758 = vmatpush.bf16.msra.mxu0 0
    %759 = vmatpush.bf16.msra.mxu0 0
    %760 = vmatpush.bf16.msra.mxu0 0
    %761 = vmatpush.bf16.msra.mxu0 0
    %762 = vmatpush.bf16.msra.mxu0 0
    %763 = vmatpush.bf16.msra.mxu0 %v751
    %764 = vmatpush.bf16.msra.mxu0 %v750
    %765 = vmatmul.bf16.gmra.mxu0 %v755
    %v766 = vpop.f32.mrf.mxu0
    %v767 = vadd.f32 %v741, %v766
    %v768 = vpop.f32.mrf.mxu0
    %769 = vdwg.mxu0
    %v770 = vmax.f32 %v767, 0.0
    %v771 = vpack.c.bf16 %v770, %v770
    %s772 = scalar_lea.vmem [#allocation2], 80
    %v773 = vld [vmem:[%s772] sm:$0xf]
    %v774 = vld [vmem:[%s772 + $0x4] sm:$0xf]
    %v775 = vld [vmem:[%s772 + $0x8] sm:$0xf]
    %v776 = vld [vmem:[%s772 + $0xc] sm:$0xf]
    %v777 = vld [vmem:[%s4 + $0x5] sm:$0x1]
    %v778 = vperm.slane %v777, 0
    %v783 = vunpack.c.l.b16 %v773
    %v784 = vunpack.c.l.b16 %v774
    %v785 = vunpack.c.l.b16 %v775
    %v786 = vunpack.c.l.b16 %v776
    %v787 = vpack.c.b16 %v784, %v783
    %v788 = vpack.c.b16 %v786, %v785
    %v792 = vsel %vm126, %v771, 0
    %794 = vmatpush.bf16.msra.mxu0 0
    %795 = vmatpush.bf16.msra.mxu0 0
    %796 = vmatpush.bf16.msra.mxu0 0
    %797 = vmatpush.bf16.msra.mxu0 0
    %798 = vmatpush.bf16.msra.mxu0 0
    %799 = vmatpush.bf16.msra.mxu0 0
    %800 = vmatpush.bf16.msra.mxu0 %v788
    %801 = vmatpush.bf16.msra.mxu0 %v787
    %802 = vmatmul.bf16.gmra.mxu0 %v792
    %v803 = vpop.f32.mrf.mxu0
    %v804 = vadd.f32 %v778, %v803
    %v805 = vpop.f32.mrf.mxu0
    %806 = vdwg.mxu0
    %807 = vst.msk [vmem:[#allocation5] sm:$0xff] %vm126, %v804
    // Predicated region
    $region26: #{tpu_custom_call.1} parent=1 // pred_check
      _
    $region27: #{tpu_custom_call.1} parent=1 // pred_check_branch
      %809 = sbr.rel (0) target = $region29
    $region28: #{tpu_custom_call.1} parent=1 // pred_region
      %811 = vsyncadd [#allocation4], 0
      %s813 = sshll.u32 [#allocation5], 4
      %s814 = int_to_ptr.vmem [resolvable:$true] %s813
      %s815 = sshll.u32 %s5, 4
      %s816 = int_to_ptr.hbm [resolvable:$true] %s815
      %818 = dma.vmem_to_hbm [thread:$0]  %s814, 128, %s816, [#allocation4]
    $region29: #{tpu_custom_call.1} parent=1 // pred_fallthru
      _
    // Predicated region
    $region30: #{tpu_custom_call.1} parent=1 // pred_check
      _
    $region31: #{tpu_custom_call.1} parent=1 // pred_check_branch
      %820 = sbr.rel (0) target = $region33
    $region32: #{tpu_custom_call.1} parent=1 // pred_region
      %822 = dma.done [#allocation4], 128
    $region33: #{tpu_custom_call.1} parent=1 // pred_fallthru
      _
    %823 = vsyncpa [#allocation3], 1
    %824 = vsyncpa [#allocation4], 1

</llo_original>
